<compile_context>
chip_gen: v7x
topology: tpu7x:2x2x1
jax: 0.10.0
libtpu: 0.0.40
codegen_flags: <defaults>
</compile_context>

<pallas_src>
import functools

import jax
import jax.numpy as jnp
from jax.experimental import pallas as pl
from jax.experimental.pallas import tpu as pltpu


def _round_up(x: int, m: int) -> int:
    return (x + m - 1) // m * m


def _distill_kl_kernel(ys_ref, yt_ref, out_ref, acc_ref, *, inv_t, scale):
    """Accumulates sum(p_t * (log p_t - log p_s)) over batch tiles.

    Uses the identity
        p_t * (log_p_t - log_p_s)
          = (exp_t / z_t) * ((t_shift - s_shift) + (log_z_s - log_z_t))
    so no full-tile log-prob / probability temporaries are materialized.
    """
    i = pl.program_id(0)

    @pl.when(i == 0)
    def _init():
        acc_ref[0] = jnp.float32(0.0)

    s = ys_ref[...].astype(jnp.float32) * inv_t  # student logits / T
    t = yt_ref[...].astype(jnp.float32) * inv_t  # teacher logits / T

    s_shift = s - jnp.max(s, axis=1, keepdims=True)
    t_shift = t - jnp.max(t, axis=1, keepdims=True)

    log_z_s = jnp.log(jnp.sum(jnp.exp(s_shift), axis=1, keepdims=True))
    exp_t = jnp.exp(t_shift)
    z_t = jnp.sum(exp_t, axis=1, keepdims=True)
    log_z_t = jnp.log(z_t)

    # Fused log-prob difference (no log_p_s / log_p_t tiles).
    diff = (t_shift - s_shift) + (log_z_s - log_z_t)

    # Teacher normalization hoisted to per-row (N reciprocals, not N*C muls).
    row_kl = jnp.sum(exp_t * diff, axis=1, keepdims=True)  # (tile_n, 1)
    inv_z = pl.reciprocal(z_t, approx=True)                # EUP slot (cheap)
    inv_z = inv_z * (2.0 - z_t * inv_z)                    # 1 Newton step -> f32 accuracy
    acc_ref[0] += jnp.sum(row_kl * inv_z)

    @pl.when(i == pl.num_programs(0) - 1)
    def _finalize():
        out_ref[0, 0] = acc_ref[0] * scale


def distill_kl(
    y_s: jax.Array,
    y_t: jax.Array,
    temperature: float,
    *,
    block_bytes: int = 4 * 1024 * 1024,
) -> jax.Array:
    """KL distillation loss; matches DistillKL.forward(y_s, y_t). Returns scalar f32."""
    assert y_s.shape == y_t.shape and y_s.ndim == 2
    n, c = y_s.shape
    temp = float(temperature)

    # Rows per tile, sized against an f32 working-set budget; multiple of 8.
    rows = max(8, (block_bytes // (c * 4)) // 8 * 8)
    tile_n = min(_round_up(n, 8), rows)
    n_pad = _round_up(n, tile_n)
    if n_pad != n:
        # Zero-padded rows contribute exactly 0 to the KL sum.
        y_s = jnp.pad(y_s, ((0, n_pad - n), (0, 0)))
        y_t = jnp.pad(y_t, ((0, n_pad - n), (0, 0)))

    grid = (n_pad // tile_n,)

    kernel = functools.partial(
        _distill_kl_kernel,
        inv_t=1.0 / temp,
        scale=temp * temp / n,  # T^2 / N uses the ORIGINAL batch size
    )

    # VMEM budget: 2 inputs x 2 pipeline buffers + ~6 tile-sized f32 temps.
    in_bytes = tile_n * c * jnp.dtype(y_s.dtype).itemsize
    f32_bytes = tile_n * c * 4
    vmem_limit = int(min(4 * in_bytes + 6 * f32_bytes + (2 << 20), 48 << 20))
    vmem_limit = max(vmem_limit, 16 << 20)

    out = pl.pallas_call(
        kernel,
        out_shape=jax.ShapeDtypeStruct((1, 1), jnp.float32),
        grid_spec=pltpu.PrefetchScalarGridSpec(
            num_scalar_prefetch=0,
            grid=grid,
            in_specs=[
                pl.BlockSpec((tile_n, c), lambda i: (i, 0)),
                pl.BlockSpec((tile_n, c), lambda i: (i, 0)),
            ],
            out_specs=pl.BlockSpec(memory_space=pltpu.MemorySpace.SMEM),
            scratch_shapes=[pltpu.SMEM((1,), jnp.float32)],
        ),
        compiler_params=pltpu.CompilerParams(
            dimension_semantics=("arbitrary",),
            vmem_limit_bytes=vmem_limit,
        ),
    )(y_s, y_t)
    return out[0, 0]


def _distill_kl_reference(y_s, y_t, temperature):
    """Pure-JAX reference mirroring the PyTorch module."""
    T = temperature
    log_p_s = jax.nn.log_softmax(y_s / T, axis=1)
    p_t = jax.nn.softmax(y_t / T, axis=1)
    log_p_t = jax.nn.log_softmax(y_t / T, axis=1)
    kl = jnp.sum(p_t * (log_p_t - log_p_s))
    return kl * (T ** 2) / y_s.shape[0]


if __name__ == "__main__":
    key = jax.random.PRNGKey(0)
    k1, k2, k3, k4 = jax.random.split(key, 4)

    temperature = 4.0  # DistillKL(T=4)

    # Case 1: small (N, C) logits, single tile.
    batch, num_classes = 8, 32
    y_s = jax.random.normal(k1, (batch, num_classes), dtype=jnp.float32)
    y_t = jax.random.normal(k2, (batch, num_classes), dtype=jnp.float32)

    loss = jax.block_until_ready(distill_kl(y_s, y_t, temperature))
    ref = _distill_kl_reference(y_s, y_t, temperature)
    assert jnp.allclose(loss, ref, rtol=1e-4, atol=1e-6), (loss, ref)

    # Case 2: exercise the multi-tile grid + zero-padding path with a tiny
    # per-block budget (tile_n = 8, N = 20 -> padded to 24, grid = 3).
    batch2 = 20
    y_s2 = jax.random.normal(k3, (batch2, num_classes), dtype=jnp.float32)
    y_t2 = jax.random.normal(k4, (batch2, num_classes), dtype=jnp.float32)

    loss2 = jax.block_until_ready(
        distill_kl(y_s2, y_t2, temperature, block_bytes=num_classes * 4 * 8)
    )
    ref2 = _distill_kl_reference(y_s2, y_t2, temperature)
    assert jnp.allclose(loss2, ref2, rtol=1e-4, atol=1e-6), (loss2, ref2)

    print("KERNEL_OK")
</pallas_src>

<mosaic_0001>
module attributes {stable_mosaic.version = 11 : i64} {
  func.func @_distill_kl_kernel(%arg0: i32, %arg1: memref<8x32xf32, #tpu.memory_space<vmem>>, %arg2: memref<8x32xf32, #tpu.memory_space<vmem>>, %arg3: memref<1x1xf32, #tpu.memory_space<smem>>, %arg4: memref<1xf32, #tpu.memory_space<smem>>) attributes {dimension_semantics = [#tpu.dimension_semantics<arbitrary>], iteration_bounds = array<i64: 1>, scalar_prefetch = 0 : i64, scratch_operands = 1 : i64, tpu.core_type = #tpu.core_type<tc>, window_params = [{transform_indices = @transform_0, window_bounds = array<i64: 8, 32>}, {transform_indices = @transform_1, window_bounds = array<i64: 8, 32>}, {transform_indices = @transform_2, window_bounds = array<i64: 1, 1>}]} {
    %c0_i32 = arith.constant 0 : i32
    %0 = arith.cmpi eq, %arg0, %c0_i32 : i32
    %1 = arith.extui %0 : i1 to i32
    %c0_i32_0 = arith.constant 0 : i32
    %2 = arith.cmpi ne, %1, %c0_i32_0 : i32
    scf.if %2 {
      %cst_16 = arith.constant 0.000000e+00 : f32
      %c0_17 = arith.constant 0 : index
      %48 = memref.load %arg4[%c0_17] : memref<1xf32, #tpu.memory_space<smem>>
      memref.store %cst_16, %arg4[%c0_17] : memref<1xf32, #tpu.memory_space<smem>>
    } else {
    }
    %c0 = arith.constant 0 : index
    %c0_1 = arith.constant 0 : index
    %3 = vector.load %arg1[%c0, %c0_1] : memref<8x32xf32, #tpu.memory_space<vmem>>, vector<8x32xf32>
    %cst = arith.constant 2.500000e-01 : f32
    %4 = vector.broadcast %cst : f32 to vector<8x32xf32>
    %5 = arith.mulf %3, %4 : vector<8x32xf32>
    %c0_2 = arith.constant 0 : index
    %c0_3 = arith.constant 0 : index
    %6 = vector.load %arg2[%c0_2, %c0_3] : memref<8x32xf32, #tpu.memory_space<vmem>>, vector<8x32xf32>
    %cst_4 = arith.constant 2.500000e-01 : f32
    %7 = vector.broadcast %cst_4 : f32 to vector<8x32xf32>
    %8 = arith.mulf %6, %7 : vector<8x32xf32>
    %cst_5 = arith.constant dense<0xFF800000> : vector<8xf32>
    %9 = vector.multi_reduction <maximumf>, %5, %cst_5 [1] : vector<8x32xf32> to vector<8xf32>
    %10 = vector.shape_cast %9 : vector<8xf32> to vector<8x1xf32>
    %11 = vector.broadcast %10 : vector<8x1xf32> to vector<8x32xf32>
    %12 = arith.subf %5, %11 : vector<8x32xf32>
    %cst_6 = arith.constant dense<0xFF800000> : vector<8xf32>
    %13 = vector.multi_reduction <maximumf>, %8, %cst_6 [1] : vector<8x32xf32> to vector<8xf32>
    %14 = vector.shape_cast %13 : vector<8xf32> to vector<8x1xf32>
    %15 = vector.broadcast %14 : vector<8x1xf32> to vector<8x32xf32>
    %16 = arith.subf %8, %15 : vector<8x32xf32>
    %17 = math.exp %12 : vector<8x32xf32>
    %cst_7 = arith.constant dense<0.000000e+00> : vector<8xf32>
    %18 = vector.multi_reduction <add>, %17, %cst_7 [1] : vector<8x32xf32> to vector<8xf32>
    %19 = vector.shape_cast %18 : vector<8xf32> to vector<8x1xf32>
    %20 = math.log %19 : vector<8x1xf32>
    %21 = math.exp %16 : vector<8x32xf32>
    %cst_8 = arith.constant dense<0.000000e+00> : vector<8xf32>
    %22 = vector.multi_reduction <add>, %21, %cst_8 [1] : vector<8x32xf32> to vector<8xf32>
    %23 = vector.shape_cast %22 : vector<8xf32> to vector<8x1xf32>
    %24 = math.log %23 : vector<8x1xf32>
    %25 = arith.subf %16, %12 : vector<8x32xf32>
    %26 = arith.subf %20, %24 : vector<8x1xf32>
    %27 = vector.broadcast %26 : vector<8x1xf32> to vector<8x32xf32>
    %28 = arith.addf %25, %27 : vector<8x32xf32>
    %29 = arith.mulf %21, %28 : vector<8x32xf32>
    %cst_9 = arith.constant dense<0.000000e+00> : vector<8xf32>
    %30 = vector.multi_reduction <add>, %29, %cst_9 [1] : vector<8x32xf32> to vector<8xf32>
    %31 = vector.shape_cast %30 : vector<8xf32> to vector<8x1xf32>
    %32 = tpu.reciprocal %23 {approx = true} : vector<8x1xf32> -> vector<8x1xf32>
    %33 = arith.mulf %23, %32 : vector<8x1xf32>
    %cst_10 = arith.constant 2.000000e+00 : f32
    %34 = vector.broadcast %cst_10 : f32 to vector<8x1xf32>
    %35 = arith.subf %34, %33 : vector<8x1xf32>
    %36 = arith.mulf %32, %35 : vector<8x1xf32>
    %c0_11 = arith.constant 0 : index
    %37 = memref.load %arg4[%c0_11] : memref<1xf32, #tpu.memory_space<smem>>
    %38 = arith.mulf %31, %36 : vector<8x1xf32>
    %39 = vector.shape_cast %38 : vector<8x1xf32> to vector<1x8x1xf32>
    %cst_12 = arith.constant dense<0.000000e+00> : vector<1xf32>
    %40 = vector.multi_reduction <add>, %39, %cst_12 [1, 2] : vector<1x8x1xf32> to vector<1xf32>
    %41 = vector.shape_cast %40 : vector<1xf32> to vector<1x1x1xf32>
    %42 = vector.extract %41[0, 0, 0] : f32 from vector<1x1x1xf32>
    %43 = arith.addf %37, %42 : f32
    %c0_13 = arith.constant 0 : index
    %44 = memref.load %arg4[%c0_13] : memref<1xf32, #tpu.memory_space<smem>>
    memref.store %43, %arg4[%c0_13] : memref<1xf32, #tpu.memory_space<smem>>
    %c0_i32_14 = arith.constant 0 : i32
    %45 = arith.cmpi eq, %arg0, %c0_i32_14 : i32
    %46 = arith.extui %45 : i1 to i32
    %c0_i32_15 = arith.constant 0 : i32
    %47 = arith.cmpi ne, %46, %c0_i32_15 : i32
    scf.if %47 {
      %c0_16 = arith.constant 0 : index
      %48 = memref.load %arg4[%c0_16] : memref<1xf32, #tpu.memory_space<smem>>
      %cst_17 = arith.constant 2.000000e+00 : f32
      %49 = arith.mulf %48, %cst_17 : f32
      %c0_18 = arith.constant 0 : index
      %c0_19 = arith.constant 0 : index
      %50 = memref.load %arg3[%c0_18, %c0_19] : memref<1x1xf32, #tpu.memory_space<smem>>
      memref.store %49, %arg3[%c0_18, %c0_19] : memref<1x1xf32, #tpu.memory_space<smem>>
    } else {
    }
    return
  }
  func.func @transform_0(%arg0: i32) -> (i32, i32) {
    %c0_i32 = arith.constant 0 : i32
    %c0_i32_0 = arith.constant 0 : i32
    return %arg0, %c0_i32 : i32, i32
  }
  func.func @transform_1(%arg0: i32) -> (i32, i32) {
    %c0_i32 = arith.constant 0 : i32
    %c0_i32_0 = arith.constant 0 : i32
    return %arg0, %c0_i32 : i32, i32
  }
  func.func @transform_2(%arg0: i32) -> (i32, i32) {
    %c0_i32 = arith.constant 0 : i32
    %c0_i32_0 = arith.constant 0 : i32
    %c0_i32_1 = arith.constant 0 : i32
    return %c0_i32, %c0_i32_0 : i32, i32
  }
}

</mosaic_0001>

<llo_original>
// kernel: tpu_custom_call.1
$region0: #{tpu_custom_call.1}
  #allocation0 [shape = 'u32[]', space=smem, size = 0x4, offset = 0x4, fixed_abs, tag = 'smem constant byte address 0x4 - core index']
  #allocation1 [shape = 'u32[144,128]{1,0:T(1,128)}', space=vmem, size = 0x12000, scoped, tag = 'internal scratch']
  #allocation2 [shape = 'f32[1]{0:T(128)}', space=smem, size = 0x200, scoped, tag = 'scratch operand']
  %s0 = inlined_call_operand.hbm [shape: f32[8,32], index: 0, kind: input, shape index: {}]
  %s1 = inlined_call_operand.hbm [shape: f32[8,32], index: 1, kind: input, shape index: {}]
  %s2 = inlined_call_operand.hbm [shape: f32[1,1], index: 2, kind: output, shape index: {}]
  %s3 = sld [smem:[#allocation0]]
  $region34: #{tpu_custom_call.1} parent=0
    _
  %s5 = ssub.s32 1, %s3
  %s6 = scalar_select 0, %s5, %s3
  $region1: #{tpu_custom_call.1} parent=0
    #allocation3 [shape = 'u8[4096]{0}', space=vmem, size = 0x1000, scoped, tag = 'input window, operand 0, single buffered']
    #allocation4 [shape = 's32[1]{0}', space=sflag, size = 0x4, scoped, tag = 'scoped memory for tpu_custom_call.1']
    #allocation5 [shape = 's32[1]{0}', space=sflag, size = 0x4, scoped, tag = 'scoped memory for tpu_custom_call.1']
    #allocation6 [shape = 'u8[4096]{0}', space=vmem, size = 0x1000, scoped, tag = 'input window, operand 1, single buffered']
    #allocation7 [shape = 's32[1]{0}', space=sflag, size = 0x4, scoped, tag = 'scoped memory for tpu_custom_call.1']
    #allocation8 [shape = 'u8[512]{0}', space=smem, size = 0x200, scoped, tag = 'output window, operand 0, single buffered']
    %7 = vsyncpa [#allocation4], 0
    %8 = vsyncpa [#allocation7], 0
    %9 = vsyncpa [#allocation5], 0
    // Predicated region
    $region2: #{tpu_custom_call.1} parent=1 // pred_check
      _
    $region3: #{tpu_custom_call.1} parent=1 // pred_check_branch
      %11 = sbr.rel (0) target = $region5
    $region4: #{tpu_custom_call.1} parent=1 // pred_region
      %s13 = ssub.s32 128, 128
      %14 = vsyncadd [#allocation4], %s13
      %s16 = sshll.u32 [#allocation3], 4
      %s17 = int_to_ptr.vmem [resolvable:$true] %s16
      %19 = dma.hbm_to_vmem [thread:$0]  %s0, 128, %s17, [#allocation4]
    $region5: #{tpu_custom_call.1} parent=1 // pred_fallthru
      _
    // Predicated region
    $region6: #{tpu_custom_call.1} parent=1 // pred_check
      _
    $region7: #{tpu_custom_call.1} parent=1 // pred_check_branch
      %21 = sbr.rel (0) target = $region9
    $region8: #{tpu_custom_call.1} parent=1 // pred_region
      %s23 = ssub.s32 128, 128
      %24 = vsyncadd [#allocation7], %s23
      %s26 = sshll.u32 [#allocation6], 4
      %s27 = int_to_ptr.vmem [resolvable:$true] %s26
      %29 = dma.hbm_to_vmem [thread:$0]  %s1, 128, %s27, [#allocation7]
    $region9: #{tpu_custom_call.1} parent=1 // pred_fallthru
      _
    // Predicated region
    $region10: #{tpu_custom_call.1} parent=1 // pred_check
      _
    $region11: #{tpu_custom_call.1} parent=1 // pred_check_branch
      %31 = sbr.rel (0) target = $region13
    $region12: #{tpu_custom_call.1} parent=1 // pred_region
      %32 = dma.done [#allocation4], 128
    $region13: #{tpu_custom_call.1} parent=1 // pred_fallthru
      _
    // Predicated region
    $region14: #{tpu_custom_call.1} parent=1 // pred_check
      _
    $region15: #{tpu_custom_call.1} parent=1 // pred_check_branch
      %34 = sbr.rel (0) target = $region17
    $region16: #{tpu_custom_call.1} parent=1 // pred_region
      %35 = dma.done [#allocation7], 128
    $region17: #{tpu_custom_call.1} parent=1 // pred_fallthru
      _
    %p36 = scmp.eq.s32.totalorder 0, 0
    // Predicated region
    $region18: #{tpu_custom_call.1} parent=1 // pred_check
      %p37 = pneg %p36
    $region19: #{tpu_custom_call.1} parent=1 // pred_check_branch
      %39 = sbr.rel (%p37) target = $region21
    $region20: #{tpu_custom_call.1} parent=1 // pred_region
      %s40 = scalar_lea.smem [#allocation2], 0
      %41 = sst [smem:[%s40]] 0.0
    $region21: #{tpu_custom_call.1} parent=1 // pred_fallthru
      _
    %v42 = vld [vmem:[#allocation3] sm:$0xff]
    %v43 = vmul.f32 %v42, 0.25
    %v44 = vld [vmem:[#allocation6] sm:$0xff]
    %v45 = vmul.f32 %v44, 0.25
    %vm46 = vcmask 261120
    %v47 = vsel %vm46, %v43, -inf
    %48 = vmax.xlane.f32.xlu0 %v47
    %v49 = vpop.xlane.xlu0 %48
    %v50 = vsub.f32 %v43, %v49
    %v51 = vsel %vm46, %v45, -inf
    %52 = vmax.xlane.f32.xlu0 %v51
    %v53 = vpop.xlane.xlu0 %52
    %v54 = vsub.f32 %v45, %v53
    %v55 = vmul.f32 %v50, 1.442695
    %v56 = vpow.pop %v55
    %v57 = vsel %vm46, %v56, 0.0
    %58 = vadd.xlane.f32.xlu0 %v57
    %v59 = vpop.xlane.xlu0 %58
    %v60 = vlog2.pop %v59
    %v61 = vmul.f32 %v60, 0.6931472
    %v62 = vmul.f32 %v54, 1.442695
    %v63 = vpow.pop %v62
    %v64 = vsel %vm46, %v63, 0.0
    %65 = vadd.xlane.f32.xlu0 %v64
    %v66 = vpop.xlane.xlu0 %65
    %v67 = vlog2.pop %v66
    %v68 = vmul.f32 %v67, 0.6931472
    %v69 = vsub.f32 %v54, %v50
    %v70 = vsub.f32 %v61, %v68
    %v71 = vadd.f32 %v69, %v70
    %v72 = vmul.f32 %v63, %v71
    %v73 = vsel %vm46, %v72, 0.0
    %74 = vadd.xlane.f32.xlu0 %v73
    %v75 = vpop.xlane.xlu0 %74
    %v76 = vrcp.pop %v66
    %v77 = vmul.f32 %v66, %v76
    %v78 = vsub.f32 2.0, %v77
    %v79 = vmul.f32 %v76, %v78
    %s80 = sld [smem:[#allocation2]]
    %v81 = vmul.f32 %v75, %v79
    %vm82 = vcmask 7168
    %v83 = vsel %vm82, %v81, 0.0
    %84 = vadd.xlane.f32.xlu0 %v83
    %v85 = vpop.xlane.xlu0 %84
    %v86 = vrot.slane %v85, 4
    %v87 = vadd.f32 %v85, %v86
    %v88 = vrot.slane %v87, 2
    %v89 = vadd.f32 %v87, %v88
    %v90 = vrot.slane %v89, 1
    %v91 = vadd.f32 %v89, %v90
    %s92 = vtos %v91
    %s93 = sadd.f32 %s80, %s92
    %s94 = scalar_lea.smem [#allocation2], 0
    %95 = sst [smem:[%s94]] %s93
    // Predicated region
    $region22: #{tpu_custom_call.1} parent=1 // pred_check
      %p96 = pneg %p36
    $region23: #{tpu_custom_call.1} parent=1 // pred_check_branch
      %98 = sbr.rel (%p96) target = $region25
    $region24: #{tpu_custom_call.1} parent=1 // pred_region
      %s99 = sld [smem:[#allocation2]]
      %s100 = smul.f32 %s99, 2.0
      %s101 = scalar_lea.smem [#allocation8], 0
      %102 = sst [smem:[%s101]] %s100
    $region25: #{tpu_custom_call.1} parent=1 // pred_fallthru
      _
    // Predicated region
    $region26: #{tpu_custom_call.1} parent=1 // pred_check
      _
    $region27: #{tpu_custom_call.1} parent=1 // pred_check_branch
      %104 = sbr.rel (0) target = $region29
    $region28: #{tpu_custom_call.1} parent=1 // pred_region
      %s106 = ssub.s32 16, 16
      %107 = vsyncadd [#allocation5], %s106
      %110 = dma.smem_to_hbm [#allocation8], 16, %s2, [#allocation5]
    $region29: #{tpu_custom_call.1} parent=1 // pred_fallthru
      _
    // Predicated region
    $region30: #{tpu_custom_call.1} parent=1 // pred_check
      _
    $region31: #{tpu_custom_call.1} parent=1 // pred_check_branch
      %112 = sbr.rel (0) target = $region33
    $region32: #{tpu_custom_call.1} parent=1 // pred_region
      %113 = dma.done [#allocation5], 16
    $region33: #{tpu_custom_call.1} parent=1 // pred_fallthru
      _
    %114 = sfence
    %115 = vsyncpa [#allocation4], 1
    %116 = vsyncpa [#allocation7], 1
    %117 = vsyncpa [#allocation5], 1

</llo_original>
